<compile_context>
chip_gen: v5e
topology: v5e:2x2
jax: 0.10.0
libtpu: 0.0.40
codegen_flags: <defaults>
</compile_context>

<pallas_src>
import functools

import jax
import jax.numpy as jnp
from jax.experimental import pallas as pl
from jax.experimental.pallas import tpu as pltpu


def _round_up(n, m):
    return ((n + m - 1) // m) * m


def _probe_buffered():
    """True if this jax version supports BlockSpec(pipeline_mode=Buffered(n))."""
    try:
        pl.BlockSpec((8, 128), lambda i: (0, 0), pipeline_mode=pl.Buffered(1))
        return True
    except Exception:
        return False


_HAS_BUFFERED = _probe_buffered()


def _resident_spec(shape):
    """Constant-index (VMEM-resident across all grid steps) full block.

    Single-buffered when supported: the block index never changes, so a second
    pipeline buffer would only double the resident-parameter VMEM footprint.
    """
    index_map = lambda i: (0,) * len(shape)
    if _HAS_BUFFERED:
        return pl.BlockSpec(shape, index_map, pipeline_mode=pl.Buffered(1))
    return pl.BlockSpec(shape, index_map)


def _mlp_group_kernel(x_ref, *refs, num_layers, relu, epilogue):
    """Fused chain of `num_layers` Linear(+ReLU) layers on one batch tile.

    refs = (W_0, b_0, ..., W_{n-1}, b_{n-1}, out_ref).  Weights (bf16) and
    biases (f32) are full-block, VMEM-resident across grid steps; the running
    activation never leaves VMEM inside a group.  MXU matmuls accumulate in
    f32; bias add / ReLU / sigmoid / softmax run in f32; the activation is
    only narrowed back to bf16 to feed the next matmul / intermediate store.
    """
    out_ref = refs[2 * num_layers]

    h = x_ref[...]                                     # bf16 (TB, K)
    for l in range(num_layers):
        w = refs[2 * l][...]                           # bf16 (K, N)
        b = refs[2 * l + 1][...]                       # f32  (1, N) -> broadcasts
        z = jnp.dot(h, w, preferred_element_type=jnp.float32) + b
        if relu[l]:
            z = jnp.maximum(z, 0.0)
        h = z.astype(jnp.bfloat16) if l < num_layers - 1 else z   # f32 on last

    if epilogue == "sigmoid":
        h = jax.nn.sigmoid(h)
    elif epilogue == "softmax":
        # The output block width equals the real output_dim (no padded lanes),
        # so the row softmax needs no masking.  Exact divide for parity.
        m = jnp.max(h, axis=-1, keepdims=True)
        e = jnp.exp(h - m)
        h = e / jnp.sum(e, axis=-1, keepdims=True)

    out_ref[...] = h.astype(out_ref.dtype)


def mlp_forward(x, params, output_activation="sigmoid", tile_b=1024):
    """Fused MLP forward.

    x: (B, input_dim) f32; params: list of (W: (in, out), b: (out,)) f32,
    where W is the transpose of torch's nn.Linear.weight.
    """
    if len(params) < 2:
        raise ValueError("hidden_dims must have at least one element")
    B, in_dim = x.shape
    L = len(params)
    dims = [in_dim] + [W.shape[1] for (W, _) in params]
    for l, (W, b) in enumerate(params):
        assert W.shape == (dims[l], dims[l + 1]) and b.shape == (dims[l + 1],)
    out_dim = dims[-1]

    # Feature widths: the streamed input and final output keep their real
    # (unpadded) widths (BlockSpec dim == full array dim -> no XLA-side pad or
    # slice passes over the activation stream); hidden widths are padded to
    # 128 lanes so all intermediate work is lane-dense.
    dims_p = [in_dim] + [_round_up(d, 128) for d in dims[1:-1]] + [out_dim]

    # Batch tile: multiple of 16 (bf16 sublane packing), capped so the grid
    # has >= 2 steps whenever the batch allows (DMA overlap; v7x 2-core shard).
    TB = min(_round_up(max(tile_b, 16), 16),
             max(16, _round_up((B + 1) // 2, 16)))
    if TB >= B:
        TB = _round_up(B, 8)          # tiny batch: one full-batch tile
    grid = (pl.cdiv(B, TB),)          # ragged last tile handled by Pallas

    # bf16 storage for x / W (halved HBM + VMEM, native MXU rate); f32 biases.
    x_bf = x.astype(jnp.bfloat16)
    Wp, bp = [], []
    for l, (W, b) in enumerate(params):
        w = jnp.zeros((dims_p[l], dims_p[l + 1]), jnp.bfloat16)
        w = w.at[:dims[l], :dims[l + 1]].set(W.astype(jnp.bfloat16))
        bb = jnp.zeros((1, dims_p[l + 1]), jnp.float32).at[0, :dims[l + 1]].set(b)
        Wp.append(w)
        bp.append(bb)

    # Per-generation VMEM budget (v7x: 64 MiB/TC, v5e/v6e: 128 MiB).
    try:
        vmem_cap = int(pltpu.get_tpu_info().vmem_capacity_bytes)
    except Exception:
        vmem_cap = 64 * 2**20
    vmem_budget = int(0.85 * vmem_cap)

    w_bufs = 1 if _HAS_BUFFERED else 2    # actual buffer count of resident params
    p_bytes = [w_bufs * (int(Wp[l].size) * 2 + int(bp[l].size) * 4)
               for l in range(L)]
    # Streamed-tile double buffers + live f32 activations (generous).
    reserve = 6 * TB * max(dims_p) * 4 + (2 << 20)
    budget_params = max(vmem_budget - reserve, 4 << 20)

    # Greedily group consecutive layers so each fused pallas_call's resident
    # weights fit the budget.  Normal case: one group == fully fused MLP.
    groups, cur, cur_b = [], [], 0
    for l in range(L):
        if cur and cur_b + p_bytes[l] > budget_params:
            groups.append(cur)
            cur, cur_b = [], 0
        cur.append(l)
        cur_b += p_bytes[l]
        # TODO(synk): a single layer bigger than the VMEM budget should stream
        # its K/N dims with pltpu.emit_pipeline instead of relying on spill.
    groups.append(cur)

    relu_all = [l < L - 1 for l in range(L)]

    h = x_bf
    for gi, layer_ids in enumerate(groups):
        last_group = gi == len(groups) - 1
        epilogue = output_activation if last_group else None
        out_w = dims_p[layer_ids[-1] + 1]
        out_dtype = jnp.float32 if last_group else jnp.bfloat16
        in_w = h.shape[1]

        in_specs = [pl.BlockSpec((TB, in_w), lambda i: (i, 0))]
        flat = []
        for l in layer_ids:
            flat += [Wp[l], bp[l]]
            in_specs.append(_resident_spec(Wp[l].shape))
            in_specs.append(_resident_spec(bp[l].shape))

        group_bytes = sum(p_bytes[l] for l in layer_ids)
        vmem_limit = int(min(vmem_budget,
                             max(group_bytes + reserve, 16 << 20)))

        kernel = functools.partial(
            _mlp_group_kernel,
            num_layers=len(layer_ids),
            relu=tuple(relu_all[l] for l in layer_ids),
            epilogue=epilogue)

        h = pl.pallas_call(
            kernel,
            out_shape=jax.ShapeDtypeStruct((B, out_w), out_dtype),
            grid=grid,
            in_specs=in_specs,
            out_specs=pl.BlockSpec((TB, out_w), lambda i: (i, 0)),
            compiler_params=pltpu.CompilerParams(
                dimension_semantics=("parallel",),
                vmem_limit_bytes=vmem_limit),
        )(h, *flat)

    return h   # (B, output_dim) f32 — nothing to slice


def init_mlp_params(key, input_dim, hidden_dims, output_dim):
    """Deterministic init matching nn.Linear fan-in scaling.

    Returns list of (W, b) with W: (in, out) — transpose of torch layout.
    """
    dims = [input_dim] + list(hidden_dims) + [output_dim]
    params = []
    for i in range(len(dims) - 1):
        key, kw, kb = jax.random.split(key, 3)
        bound = 1.0 / jnp.sqrt(dims[i])
        W = jax.random.uniform(kw, (dims[i], dims[i + 1]),
                               minval=-bound, maxval=bound, dtype=jnp.float32)
        b = jax.random.uniform(kb, (dims[i + 1],),
                               minval=-bound, maxval=bound, dtype=jnp.float32)
        params.append((W, b))
    return params


def mlp_reference_bf16(x, params, output_activation="sigmoid"):
    """Pure-JAX reference mirroring the kernel numerics (bf16 storage,
    f32 accumulation, f32 elementwise)."""
    h = x.astype(jnp.bfloat16)
    L = len(params)
    for l, (W, b) in enumerate(params):
        z = jnp.dot(h, W.astype(jnp.bfloat16),
                    preferred_element_type=jnp.float32) + b
        if l < L - 1:
            h = jnp.maximum(z, 0.0).astype(jnp.bfloat16)
        else:
            h = z
    if output_activation == "sigmoid":
        return jax.nn.sigmoid(h)
    return jax.nn.softmax(h, axis=1)


def mlp_reference_f32(x, params, output_activation="sigmoid"):
    """Full-f32 reference (module semantics)."""
    h = x
    for (W, b) in params[:-1]:
        h = jnp.maximum(h @ W + b, 0.0)
    W, b = params[-1]
    z = h @ W + b
    if output_activation == "sigmoid":
        return jax.nn.sigmoid(z)
    return jax.nn.softmax(z, axis=1)


if __name__ == "__main__":
    key = jax.random.PRNGKey(0)
    key, kx, kp, kx2 = jax.random.split(key, 4)

    batch = 8
    input_dim = 32
    hidden_dims = [64, 32]
    output_dim = 16

    x = jax.random.normal(kx, (batch, input_dim), dtype=jnp.float32)
    params = init_mlp_params(kp, input_dim, hidden_dims, output_dim)

    # Default module config: sigmoid output.
    out = jax.block_until_ready(mlp_forward(x, params, "sigmoid"))
    assert out.shape == (batch, output_dim)
    assert jnp.allclose(out, mlp_reference_bf16(x, params, "sigmoid"),
                        atol=1e-4, rtol=1e-4), "sigmoid mismatch (bf16 ref)"
    assert jnp.allclose(out, mlp_reference_f32(x, params, "sigmoid"),
                        atol=5e-2, rtol=5e-2), "sigmoid mismatch (f32 ref)"

    # Fused softmax(dim=1) epilogue (exact divide, unpadded output lanes).
    out_sm = jax.block_until_ready(mlp_forward(x, params, "softmax"))
    assert jnp.allclose(out_sm, mlp_reference_bf16(x, params, "softmax"),
                        atol=1e-4, rtol=1e-3), "softmax mismatch"

    # Larger, non-aligned batch: grid > 1, ragged last tile (no batch padding).
    x2 = jax.random.normal(kx2, (200, input_dim), dtype=jnp.float32)
    out2 = jax.block_until_ready(mlp_forward(x2, params, "sigmoid", tile_b=64))
    assert out2.shape == (200, output_dim)
    assert jnp.allclose(out2, mlp_reference_bf16(x2, params, "sigmoid"),
                        atol=1e-4, rtol=1e-4), "tiled batch mismatch"

    print("KERNEL_OK")
</pallas_src>

<mosaic_0001>
module attributes {stable_mosaic.version = 11 : i64} {
  func.func @_mlp_group_kernel(%arg0: i32, %arg1: memref<8x32xbf16, #tpu.memory_space<vmem>>, %arg2: memref<32x128xbf16, #tpu.memory_space<vmem>>, %arg3: memref<1x128xf32, #tpu.memory_space<vmem>>, %arg4: memref<128x128xbf16, #tpu.memory_space<vmem>>, %arg5: memref<1x128xf32, #tpu.memory_space<vmem>>, %arg6: memref<128x16xbf16, #tpu.memory_space<vmem>>, %arg7: memref<1x16xf32, #tpu.memory_space<vmem>>, %arg8: memref<8x16xf32, #tpu.memory_space<vmem>>) attributes {dimension_semantics = [#tpu.dimension_semantics<parallel>], iteration_bounds = array<i64: 1>, scalar_prefetch = 0 : i64, scratch_operands = 0 : i64, tpu.core_type = #tpu.core_type<tc>, window_params = [{transform_indices = @transform_0, window_bounds = array<i64: 8, 32>}, {pipeline_mode = #tpu.pipeline_mode<synchronous>, transform_indices = @transform_1, window_bounds = array<i64: 32, 128>}, {pipeline_mode = #tpu.pipeline_mode<synchronous>, transform_indices = @transform_2, window_bounds = array<i64: 1, 128>}, {pipeline_mode = #tpu.pipeline_mode<synchronous>, transform_indices = @transform_3, window_bounds = array<i64: 128, 128>}, {pipeline_mode = #tpu.pipeline_mode<synchronous>, transform_indices = @transform_4, window_bounds = array<i64: 1, 128>}, {pipeline_mode = #tpu.pipeline_mode<synchronous>, transform_indices = @transform_5, window_bounds = array<i64: 128, 16>}, {pipeline_mode = #tpu.pipeline_mode<synchronous>, transform_indices = @transform_6, window_bounds = array<i64: 1, 16>}, {transform_indices = @transform_7, window_bounds = array<i64: 8, 16>}]} {
    %c0 = arith.constant 0 : index
    %c0_0 = arith.constant 0 : index
    %0 = vector.load %arg1[%c0, %c0_0] : memref<8x32xbf16, #tpu.memory_space<vmem>>, vector<8x32xbf16>
    %c0_1 = arith.constant 0 : index
    %c0_2 = arith.constant 0 : index
    %1 = vector.load %arg2[%c0_1, %c0_2] : memref<32x128xbf16, #tpu.memory_space<vmem>>, vector<32x128xbf16>
    %c0_3 = arith.constant 0 : index
    %c0_4 = arith.constant 0 : index
    %2 = vector.load %arg3[%c0_3, %c0_4] : memref<1x128xf32, #tpu.memory_space<vmem>>, vector<1x128xf32>
    %cst = arith.constant dense<0.000000e+00> : vector<8x128xf32>
    %3 = tpu.matmul %0, %1, %cst {dimension_numbers = #tpu.dot_dimension_numbers<[1], [0], [0], [1], [0, 0, 1, 1], [], []>} : vector<8x32xbf16>, vector<32x128xbf16>, vector<8x128xf32> -> vector<8x128xf32>
    %4 = vector.broadcast %2 : vector<1x128xf32> to vector<8x128xf32>
    %5 = arith.addf %3, %4 : vector<8x128xf32>
    %cst_5 = arith.constant 0.000000e+00 : f32
    %6 = vector.broadcast %cst_5 : f32 to vector<8x128xf32>
    %7 = arith.maximumf %5, %6 : vector<8x128xf32>
    %8 = arith.truncf %7 : vector<8x128xf32> to vector<8x128xbf16>
    %c0_6 = arith.constant 0 : index
    %c0_7 = arith.constant 0 : index
    %9 = vector.load %arg4[%c0_6, %c0_7] : memref<128x128xbf16, #tpu.memory_space<vmem>>, vector<128x128xbf16>
    %c0_8 = arith.constant 0 : index
    %c0_9 = arith.constant 0 : index
    %10 = vector.load %arg5[%c0_8, %c0_9] : memref<1x128xf32, #tpu.memory_space<vmem>>, vector<1x128xf32>
    %cst_10 = arith.constant dense<0.000000e+00> : vector<8x128xf32>
    %11 = tpu.matmul %8, %9, %cst_10 {dimension_numbers = #tpu.dot_dimension_numbers<[1], [0], [0], [1], [0, 0, 1, 1], [], []>} : vector<8x128xbf16>, vector<128x128xbf16>, vector<8x128xf32> -> vector<8x128xf32>
    %12 = vector.broadcast %10 : vector<1x128xf32> to vector<8x128xf32>
    %13 = arith.addf %11, %12 : vector<8x128xf32>
    %cst_11 = arith.constant 0.000000e+00 : f32
    %14 = vector.broadcast %cst_11 : f32 to vector<8x128xf32>
    %15 = arith.maximumf %13, %14 : vector<8x128xf32>
    %16 = arith.truncf %15 : vector<8x128xf32> to vector<8x128xbf16>
    %c0_12 = arith.constant 0 : index
    %c0_13 = arith.constant 0 : index
    %17 = vector.load %arg6[%c0_12, %c0_13] : memref<128x16xbf16, #tpu.memory_space<vmem>>, vector<128x16xbf16>
    %c0_14 = arith.constant 0 : index
    %c0_15 = arith.constant 0 : index
    %18 = vector.load %arg7[%c0_14, %c0_15] : memref<1x16xf32, #tpu.memory_space<vmem>>, vector<1x16xf32>
    %cst_16 = arith.constant dense<0.000000e+00> : vector<8x16xf32>
    %19 = tpu.matmul %16, %17, %cst_16 {dimension_numbers = #tpu.dot_dimension_numbers<[1], [0], [0], [1], [0, 0, 1, 1], [], []>} : vector<8x128xbf16>, vector<128x16xbf16>, vector<8x16xf32> -> vector<8x16xf32>
    %20 = vector.broadcast %18 : vector<1x16xf32> to vector<8x16xf32>
    %21 = arith.addf %19, %20 : vector<8x16xf32>
    %22 = arith.negf %21 : vector<8x16xf32>
    %23 = math.exp %22 : vector<8x16xf32>
    %cst_17 = arith.constant 1.000000e+00 : f32
    %24 = vector.broadcast %cst_17 : f32 to vector<8x16xf32>
    %25 = arith.addf %24, %23 : vector<8x16xf32>
    %26 = arith.divf %24, %25 : vector<8x16xf32>
    %c0_18 = arith.constant 0 : index
    %c0_19 = arith.constant 0 : index
    %27 = vector.load %arg8[%c0_18, %c0_19] : memref<8x16xf32, #tpu.memory_space<vmem>>, vector<8x16xf32>
    tpu.vector_store %arg8[%c0_18, %c0_19], %26 {strides = array<i32>} : memref<8x16xf32, #tpu.memory_space<vmem>>, vector<8x16xf32>,
    return
  }
  func.func @transform_0(%arg0: i32) -> (i32, i32) {
    %c0_i32 = arith.constant 0 : i32
    %c0_i32_0 = arith.constant 0 : i32
    return %arg0, %c0_i32 : i32, i32
  }
  func.func @transform_1(%arg0: i32) -> (i32, i32) {
    %c0_i32 = arith.constant 0 : i32
    %c0_i32_0 = arith.constant 0 : i32
    %c0_i32_1 = arith.constant 0 : i32
    return %c0_i32, %c0_i32_0 : i32, i32
  }
  func.func @transform_2(%arg0: i32) -> (i32, i32) {
    %c0_i32 = arith.constant 0 : i32
    %c0_i32_0 = arith.constant 0 : i32
    %c0_i32_1 = arith.constant 0 : i32
    return %c0_i32, %c0_i32_0 : i32, i32
  }
  func.func @transform_3(%arg0: i32) -> (i32, i32) {
    %c0_i32 = arith.constant 0 : i32
    %c0_i32_0 = arith.constant 0 : i32
    %c0_i32_1 = arith.constant 0 : i32
    return %c0_i32, %c0_i32_0 : i32, i32
  }
  func.func @transform_4(%arg0: i32) -> (i32, i32) {
    %c0_i32 = arith.constant 0 : i32
    %c0_i32_0 = arith.constant 0 : i32
    %c0_i32_1 = arith.constant 0 : i32
    return %c0_i32, %c0_i32_0 : i32, i32
  }
  func.func @transform_5(%arg0: i32) -> (i32, i32) {
    %c0_i32 = arith.constant 0 : i32
    %c0_i32_0 = arith.constant 0 : i32
    %c0_i32_1 = arith.constant 0 : i32
    return %c0_i32, %c0_i32_0 : i32, i32
  }
  func.func @transform_6(%arg0: i32) -> (i32, i32) {
    %c0_i32 = arith.constant 0 : i32
    %c0_i32_0 = arith.constant 0 : i32
    %c0_i32_1 = arith.constant 0 : i32
    return %c0_i32, %c0_i32_0 : i32, i32
  }
  func.func @transform_7(%arg0: i32) -> (i32, i32) {
    %c0_i32 = arith.constant 0 : i32
    %c0_i32_0 = arith.constant 0 : i32
    return %arg0, %c0_i32 : i32, i32
  }
}

</mosaic_0001>

<llo_original>
// kernel: tpu_custom_call.1
$region0: #{tpu_custom_call.1}
  #allocation0 [shape = 'u32[]', space=smem, size = 0x4, offset = 0x4, fixed_abs, tag = 'smem constant byte address 0x4 - core index']
  #allocation1 [shape = 'u32[72,128]{1,0:T(1,128)}', space=vmem, size = 0x9000, scoped, tag = 'internal scratch']
  %s0 = inlined_call_operand.vmem [shape: bf16[8,32], index: 0, kind: input, shape index: {}]
  %s1 = inlined_call_operand.hbm [shape: bf16[32,128], index: 1, kind: input, shape index: {}]
  %s2 = inlined_call_operand.vmem [shape: f32[1,128], index: 2, kind: input, shape index: {}]
  %s3 = inlined_call_operand.vmem [shape: bf16[128,128], index: 3, kind: input, shape index: {}]
  %s4 = inlined_call_operand.vmem [shape: f32[1,128], index: 4, kind: input, shape index: {}]
  %s5 = inlined_call_operand.vmem [shape: bf16[128,16], index: 5, kind: input, shape index: {}]
  %s6 = inlined_call_operand.vmem [shape: f32[1,16], index: 6, kind: input, shape index: {}]
  %s7 = inlined_call_operand.hbm [shape: f32[8,16], index: 7, kind: output, shape index: {}]
  %s8 = sld [smem:[#allocation0]]
  $region42: #{tpu_custom_call.1} parent=0
    _
  %s10 = ssub.s32 1, %s8
  %s11 = scalar_select 0, %s10, %s8
  $region1: #{tpu_custom_call.1} parent=0
    #allocation2 [shape = 'u8[8192]{0}', space=vmem, size = 0x2000, scoped, tag = 'input window, operand 1, single buffered']
    #allocation3 [shape = 's32[1]{0}', space=sflag, size = 0x4, scoped, tag = 'scoped memory for tpu_custom_call.1']
    #allocation4 [shape = 's32[1]{0}', space=sflag, size = 0x4, scoped, tag = 'scoped memory for tpu_custom_call.1']
    #allocation5 [shape = 'u8[4096]{0}', space=vmem, size = 0x1000, scoped, tag = 'output window, operand 0, single buffered']
    %12 = vsyncpa [#allocation3], 0
    %13 = vsyncpa [#allocation4], 0
    // Predicated region
    $region2: #{tpu_custom_call.1} parent=1 // pred_check
      _
    $region3: #{tpu_custom_call.1} parent=1 // pred_check_branch
      %15 = sbr.rel (0) target = $region5
    $region4: #{tpu_custom_call.1} parent=1 // pred_region
      _
    $region5: #{tpu_custom_call.1} parent=1 // pred_fallthru
      _
    // Predicated region
    $region6: #{tpu_custom_call.1} parent=1 // pred_check
      _
    $region7: #{tpu_custom_call.1} parent=1 // pred_check_branch
      %17 = sbr.rel (0) target = $region9
    $region8: #{tpu_custom_call.1} parent=1 // pred_region
      %19 = vsyncadd [#allocation3], 0
      %s20 = sshll.u32 %s1, 4
      %s21 = int_to_ptr.hbm [resolvable:$true] %s20
      %s22 = sshll.u32 [#allocation2], 4
      %s23 = int_to_ptr.vmem [resolvable:$true] %s22
      %28 = dma.hbm_to_vmem [thread:$0]  %s21, 256, %s23, [#allocation3], 64, 64, 4
    $region9: #{tpu_custom_call.1} parent=1 // pred_fallthru
      _
    // Predicated region
    $region10: #{tpu_custom_call.1} parent=1 // pred_check
      _
    $region11: #{tpu_custom_call.1} parent=1 // pred_check_branch
      %30 = sbr.rel (0) target = $region13
    $region12: #{tpu_custom_call.1} parent=1 // pred_region
      _
    $region13: #{tpu_custom_call.1} parent=1 // pred_fallthru
      _
    // Predicated region
    $region14: #{tpu_custom_call.1} parent=1 // pred_check
      _
    $region15: #{tpu_custom_call.1} parent=1 // pred_check_branch
      %32 = sbr.rel (0) target = $region17
    $region16: #{tpu_custom_call.1} parent=1 // pred_region
      _
    $region17: #{tpu_custom_call.1} parent=1 // pred_fallthru
      _
    // Predicated region
    $region18: #{tpu_custom_call.1} parent=1 // pred_check
      _
    $region19: #{tpu_custom_call.1} parent=1 // pred_check_branch
      %34 = sbr.rel (0) target = $region21
    $region20: #{tpu_custom_call.1} parent=1 // pred_region
      _
    $region21: #{tpu_custom_call.1} parent=1 // pred_fallthru
      _
    // Predicated region
    $region22: #{tpu_custom_call.1} parent=1 // pred_check
      _
    $region23: #{tpu_custom_call.1} parent=1 // pred_check_branch
      %36 = sbr.rel (0) target = $region25
    $region24: #{tpu_custom_call.1} parent=1 // pred_region
      _
    $region25: #{tpu_custom_call.1} parent=1 // pred_fallthru
      _
    // Predicated region
    $region26: #{tpu_custom_call.1} parent=1 // pred_check
      _
    $region27: #{tpu_custom_call.1} parent=1 // pred_check_branch
      %38 = sbr.rel (0) target = $region29
    $region28: #{tpu_custom_call.1} parent=1 // pred_region
      _
    $region29: #{tpu_custom_call.1} parent=1 // pred_fallthru
      _
    // Predicated region
    $region30: #{tpu_custom_call.1} parent=1 // pred_check
      _
    $region31: #{tpu_custom_call.1} parent=1 // pred_check_branch
      %40 = sbr.rel (0) target = $region33
    $region32: #{tpu_custom_call.1} parent=1 // pred_region
      %42 = dma.done [#allocation3], 256
    $region33: #{tpu_custom_call.1} parent=1 // pred_fallthru
      _
    %v44 = vld [vmem:[%s0] sm:$0xf]
    %v45 = vld [vmem:[#allocation2] sm:$0xf]
    %v46 = vld [vmem:[#allocation2 + $0x4] sm:$0xf]
    %v47 = vld [vmem:[#allocation2 + $0x8] sm:$0xf]
    %v48 = vld [vmem:[#allocation2 + $0xc] sm:$0xf]
    %v49 = vld [vmem:[%s2] sm:$0x1]
    %v51 = vperm.slane %v49, 0
    %v57 = vunpack.c.l.b16 %v45
    %v58 = vunpack.c.l.b16 %v46
    %v59 = vunpack.c.l.b16 %v47
    %v60 = vunpack.c.l.b16 %v48
    %v61 = vpack.c.b16 %v58, %v57
    %v62 = vpack.c.b16 %v60, %v59
    %vm65 = vcmask 261120
    %v67 = vsel %vm65, %v44, 0
    %69 = vmatpush.bf16.msra.mxu0 0
    %70 = vmatpush.bf16.msra.mxu0 0
    %71 = vmatpush.bf16.msra.mxu0 0
    %72 = vmatpush.bf16.msra.mxu0 0
    %73 = vmatpush.bf16.msra.mxu0 0
    %74 = vmatpush.bf16.msra.mxu0 0
    %75 = vmatpush.bf16.msra.mxu0 %v62
    %76 = vmatpush.bf16.msra.mxu0 %v61
    %77 = vmatmul.bf16.gmra.mxu0 %v67
    %v78 = vpop.f32.mrf.mxu0
    %v79 = vadd.f32 %v51, %v78
    %v80 = vpop.f32.mrf.mxu0
    %81 = vdwg.mxu0
    %v82 = vmax.f32 %v79, 0.0
    %v83 = vpack.c.bf16 %v82, %v82
    %v84 = vld [vmem:[%s3] sm:$0xf]
    %v85 = vld [vmem:[%s3 + $0x4] sm:$0xf]
    %v86 = vld [vmem:[%s3 + $0x8] sm:$0xf]
    %v87 = vld [vmem:[%s3 + $0xc] sm:$0xf]
    %v88 = vld [vmem:[%s3 + $0x10] sm:$0xf]
    %v89 = vld [vmem:[%s3 + $0x14] sm:$0xf]
    %v90 = vld [vmem:[%s3 + $0x18] sm:$0xf]
    %v91 = vld [vmem:[%s3 + $0x1c] sm:$0xf]
    %v92 = vld [vmem:[%s3 + $0x20] sm:$0xf]
    %v93 = vld [vmem:[%s3 + $0x24] sm:$0xf]
    %v94 = vld [vmem:[%s3 + $0x28] sm:$0xf]
    %v95 = vld [vmem:[%s3 + $0x2c] sm:$0xf]
    %v96 = vld [vmem:[%s3 + $0x30] sm:$0xf]
    %v97 = vld [vmem:[%s3 + $0x34] sm:$0xf]
    %v98 = vld [vmem:[%s3 + $0x38] sm:$0xf]
    %v99 = vld [vmem:[%s3 + $0x3c] sm:$0xf]
    %v100 = vld [vmem:[%s4] sm:$0x1]
    %v102 = vperm.slane %v100, 0
    %v120 = vunpack.c.l.b16 %v84
    %v121 = vunpack.c.l.b16 %v85
    %v122 = vunpack.c.l.b16 %v86
    %v123 = vunpack.c.l.b16 %v87
    %v124 = vunpack.c.l.b16 %v88
    %v125 = vunpack.c.l.b16 %v89
    %v126 = vunpack.c.l.b16 %v90
    %v127 = vunpack.c.l.b16 %v91
    %v128 = vunpack.c.l.b16 %v92
    %v129 = vunpack.c.l.b16 %v93
    %v130 = vunpack.c.l.b16 %v94
    %v131 = vunpack.c.l.b16 %v95
    %v132 = vunpack.c.l.b16 %v96
    %v133 = vunpack.c.l.b16 %v97
    %v134 = vunpack.c.l.b16 %v98
    %v135 = vunpack.c.l.b16 %v99
    %v136 = vpack.c.b16 %v121, %v120
    %v137 = vpack.c.b16 %v123, %v122
    %v138 = vpack.c.b16 %v125, %v124
    %v139 = vpack.c.b16 %v127, %v126
    %v140 = vpack.c.b16 %v129, %v128
    %v141 = vpack.c.b16 %v131, %v130
    %v142 = vpack.c.b16 %v133, %v132
    %v143 = vpack.c.b16 %v135, %v134
    %152 = vmatpush.bf16.msra.mxu0 %v143
    %153 = vmatpush.bf16.msra.mxu0 %v142
    %154 = vmatpush.bf16.msra.mxu0 %v141
    %155 = vmatpush.bf16.msra.mxu0 %v140
    %156 = vmatpush.bf16.msra.mxu0 %v139
    %157 = vmatpush.bf16.msra.mxu0 %v138
    %158 = vmatpush.bf16.msra.mxu0 %v137
    %159 = vmatpush.bf16.msra.mxu0 %v136
    %160 = vmatmul.bf16.gmra.mxu0 %v83
    %v161 = vpop.f32.mrf.mxu0
    %v162 = vadd.f32 %v102, %v161
    %v163 = vpop.f32.mrf.mxu0
    %164 = vdwg.mxu0
    %v165 = vmax.f32 %v162, 0.0
    %v166 = vpack.c.bf16 %v165, %v165
    %v167 = vld [vmem:[%s5] sm:$0xf]
    %v168 = vld [vmem:[%s5 + $0x4] sm:$0xf]
    %v169 = vld [vmem:[%s5 + $0x8] sm:$0xf]
    %v170 = vld [vmem:[%s5 + $0xc] sm:$0xf]
    %v171 = vld [vmem:[%s5 + $0x10] sm:$0xf]
    %v172 = vld [vmem:[%s5 + $0x14] sm:$0xf]
    %v173 = vld [vmem:[%s5 + $0x18] sm:$0xf]
    %v174 = vld [vmem:[%s5 + $0x1c] sm:$0xf]
    %v175 = vld [vmem:[%s5 + $0x20] sm:$0xf]
    %v176 = vld [vmem:[%s5 + $0x24] sm:$0xf]
    %v177 = vld [vmem:[%s5 + $0x28] sm:$0xf]
    %v178 = vld [vmem:[%s5 + $0x2c] sm:$0xf]
    %v179 = vld [vmem:[%s5 + $0x30] sm:$0xf]
    %v180 = vld [vmem:[%s5 + $0x34] sm:$0xf]
    %v181 = vld [vmem:[%s5 + $0x38] sm:$0xf]
    %v182 = vld [vmem:[%s5 + $0x3c] sm:$0xf]
    %v183 = vld [vmem:[%s6] sm:$0x1]
    %v185 = vperm.slane %v183, 0
    %v203 = vunpack.c.l.b16 %v167
    %v204 = vunpack.c.l.b16 %v168
    %v205 = vunpack.c.l.b16 %v169
    %v206 = vunpack.c.l.b16 %v170
    %v207 = vunpack.c.l.b16 %v171
    %v208 = vunpack.c.l.b16 %v172
    %v209 = vunpack.c.l.b16 %v173
    %v210 = vunpack.c.l.b16 %v174
    %v211 = vunpack.c.l.b16 %v175
    %v212 = vunpack.c.l.b16 %v176
    %v213 = vunpack.c.l.b16 %v177
    %v214 = vunpack.c.l.b16 %v178
    %v215 = vunpack.c.l.b16 %v179
    %v216 = vunpack.c.l.b16 %v180
    %v217 = vunpack.c.l.b16 %v181
    %v218 = vunpack.c.l.b16 %v182
    %v219 = vpack.c.b16 %v204, %v203
    %v220 = vpack.c.b16 %v206, %v205
    %v221 = vpack.c.b16 %v208, %v207
    %v222 = vpack.c.b16 %v210, %v209
    %v223 = vpack.c.b16 %v212, %v211
    %v224 = vpack.c.b16 %v214, %v213
    %v225 = vpack.c.b16 %v216, %v215
    %v226 = vpack.c.b16 %v218, %v217
    %235 = vmatpush.bf16.msra.mxu0 %v226
    %236 = vmatpush.bf16.msra.mxu0 %v225
    %237 = vmatpush.bf16.msra.mxu0 %v224
    %238 = vmatpush.bf16.msra.mxu0 %v223
    %239 = vmatpush.bf16.msra.mxu0 %v222
    %240 = vmatpush.bf16.msra.mxu0 %v221
    %241 = vmatpush.bf16.msra.mxu0 %v220
    %242 = vmatpush.bf16.msra.mxu0 %v219
    %243 = vmatmul.bf16.gmra.mxu0 %v166
    %v244 = vpop.f32.mrf.mxu0
    %v245 = vadd.f32 %v185, %v244
    %v246 = vpop.f32.mrf.mxu0
    %247 = vdwg.mxu0
    %v248 = vxor.u32 %v245, 2147483648
    %v249 = vmul.f32 %v248, 1.442695
    %v250 = vpow.pop %v249
    %v251 = vadd.f32 %v250, 1.0
    %v252 = vrcp.pop %v251
    %v253 = vmul.f32 %v251, %v252
    %v254 = vsub.f32 1.0, %v253
    %v255 = vmul.f32 %v252, %v254
    %v256 = vadd.f32 %v252, %v255
    %vm257 = vweird.f32 %v251
    %vm258 = vweird.f32 %v252
    %vm259 = vmor %vm257, %vm258
    %v260 = vsel %vm259, %v252, %v256
    %v261 = vand.u32 2147483647, %v251
    %vm262 = vcmp.eq.f32.partialorder %v261, 8.507059e+37
    %v263 = vand.u32 %v251, 2147483648
    %v264 = vor.u32 1.1754944e-38, %v263
    %v265 = vsel %vm262, %v264, %v260
    %v266 = vmul.f32 1.0, %v265
    %vm267 = vcmask 130048
    %268 = vst.msk [vmem:[#allocation5] sm:$0xff] %vm267, %v266
    // Predicated region
    $region34: #{tpu_custom_call.1} parent=1 // pred_check
      _
    $region35: #{tpu_custom_call.1} parent=1 // pred_check_branch
      %270 = sbr.rel (0) target = $region37
    $region36: #{tpu_custom_call.1} parent=1 // pred_region
      %272 = vsyncadd [#allocation4], 0
      %s274 = sshll.u32 [#allocation5], 4
      %s275 = int_to_ptr.vmem [resolvable:$true] %s274
      %s276 = sshll.u32 %s7, 4
      %s277 = int_to_ptr.hbm [resolvable:$true] %s276
      %279 = dma.vmem_to_hbm [thread:$0]  %s275, 128, %s277, [#allocation4]
    $region37: #{tpu_custom_call.1} parent=1 // pred_fallthru
      _
    // Predicated region
    $region38: #{tpu_custom_call.1} parent=1 // pred_check
      _
    $region39: #{tpu_custom_call.1} parent=1 // pred_check_branch
      %281 = sbr.rel (0) target = $region41
    $region40: #{tpu_custom_call.1} parent=1 // pred_region
      %283 = dma.done [#allocation4], 128
    $region41: #{tpu_custom_call.1} parent=1 // pred_fallthru
      _
    %284 = vsyncpa [#allocation3], 1
    %285 = vsyncpa [#allocation4], 1

</llo_original>
